<compile_context>
chip_gen: v6e
topology: v6e:2x2x1
jax: 0.10.0
libtpu: 0.0.40
codegen_flags: <defaults>
</compile_context>

<pallas_src>
import functools

import jax
import jax.numpy as jnp
from jax import lax
from jax.experimental import pallas as pl
from jax.experimental.pallas import tpu as pltpu

_LANES = 128
_SUBLANES = 8
_UNROLLED_CLASS_LIMIT = 16


def _round_up(x, m):
    return ((x + m - 1) // m) * m


def _cdiv(a, b):
    return -(-a // b)


def _fold_over_classes(lo, hi, body, init, *, unrolled):
    """Fold body(k, carry) -> carry over k in [lo, hi)."""
    if unrolled:
        carry = init
        for k in range(lo, hi):
            carry = body(k, carry)
        return carry
    return lax.fori_loop(lo, hi, body, init, unroll=4)


def _seg_loss_kernel(w_ref, pred_ref, tgt_ref, out_ref, *,
                     num_classes, rows, row_tile):
    t = pl.program_id(2)

    @pl.when(t == 0)
    def _init():
        out_ref[...] = jnp.zeros_like(out_ref)

    unrolled = num_classes <= _UNROLLED_CLASS_LIMIT

    def logit(k):
        # Native-dtype VMEM load, in-kernel cast; dense (row_tile, 128) tile.
        return pred_ref[k].astype(jnp.float32)

    # log-sum-exp over the (small) class axis; c-1 elementwise max / c exps.
    m = _fold_over_classes(
        1, num_classes, lambda k, acc: jnp.maximum(acc, logit(k)), logit(0),
        unrolled=unrolled)
    se = _fold_over_classes(
        0, num_classes, lambda k, acc: acc + jnp.exp(logit(k) - m),
        jnp.zeros_like(m), unrolled=unrolled)
    lse = m + jnp.log(se)

    tgt = tgt_ref[...].astype(jnp.int32)                      # (row_tile, 128)

    if rows % row_tile != 0:
        # Ragged last row-tile: rows past `rows` come from Pallas' implicit
        # out-of-bounds block padding (unspecified bits).  Re-label them so
        # they match no class and contribute exactly zero (any NaN/inf in
        # their lse is never selected by the jnp.where below).
        row_id = lax.broadcasted_iota(jnp.int32, (row_tile, _LANES), 0)
        tgt = jnp.where(row_id < rows - t * row_tile, tgt, -1)

    # Weighted NLL: each pixel matches at most one class, so a select chain
    # (vsel) accumulates without an extra one-hot cast/mul/add per class.
    # Labels outside [0, C) — ignore_index or padding — match nothing -> 0.
    nll = _fold_over_classes(
        0, num_classes,
        lambda k, acc: jnp.where(tgt == k, w_ref[k] * (lse - logit(k)), acc),
        jnp.zeros_like(m), unrolled=unrolled)

    # Per-(b, s) scalar partial, resident across the spatial-tile axis.
    out_ref[...] += jnp.sum(nll)


def segmentation_loss(prediction, target, class_weights, *,
                      ignore_index=255, use_top_k=False, top_k_ratio=1.0,
                      future_discount=1.0, block_budget_bytes=2 << 20):
    if target.shape[-3] != 1:
        raise ValueError("segmentation label must be an index-label with "
                         "channel dimension = 1.")
    if use_top_k and top_k_ratio != 1.0:
        # TODO(synk): top-k (sort along spatial dim) loss selection not implemented.
        raise NotImplementedError("use_top_k with top_k_ratio != 1.0 is not supported")

    b, s, c, h, w = prediction.shape
    if 0 <= ignore_index < c:
        raise ValueError("ignore_index must lie outside [0, num_classes) for "
                         "this kernel (matches the intended torch semantics).")
    hw = h * w

    # Flatten spatial dims; only pad (cheap, optional) to a 128-lane multiple
    # so the free (b, s, c, rows, 128) reshape exists.  Padded labels get
    # class id `c` (outside [0, c)) -> zero contribution; padded logits are 0.
    pred = prediction.reshape(b, s, c, hw)
    tgt = target.reshape(b, s, 1, hw)
    hw128 = _round_up(hw, _LANES)
    if hw128 != hw:
        pad = hw128 - hw
        pred = jnp.pad(pred, ((0, 0), (0, 0), (0, 0), (0, pad)))
        tgt = jnp.pad(tgt, ((0, 0), (0, 0), (0, 0), (0, pad)),
                      constant_values=c)
    rows = hw128 // _LANES
    pred = pred.reshape(b, s, c, rows, _LANES)      # free view
    tgt = tgt.reshape(b, s, 1, rows, _LANES)        # free view

    # Row tile from a VMEM byte budget: ~block_budget_bytes of pred+label
    # bytes per pipeline buffer (double-buffered by BlockSpec), safe on v5e
    # (16 MiB scoped default, raised below), v6e (128 MiB) and v7x (64 MiB).
    per_px_bytes = c * prediction.dtype.itemsize + target.dtype.itemsize
    budget_rows = max(_SUBLANES, block_budget_bytes // (_LANES * per_px_bytes))
    budget_rows = (budget_rows // _SUBLANES) * _SUBLANES
    if rows < _SUBLANES:
        row_tile = rows                              # block == full dim (allowed)
    else:
        row_tile = min(budget_rows, (rows // _SUBLANES) * _SUBLANES)
        n_t = _cdiv(rows, row_tile)
        # Re-balance so the ragged, masked last tile is not mostly padding.
        row_tile = min(row_tile, _round_up(_cdiv(rows, n_t), _SUBLANES))
    n_t = _cdiv(rows, row_tile)

    wts = class_weights.reshape(c).astype(jnp.float32)

    block_bytes = row_tile * _LANES * per_px_bytes
    vmem_limit = int(min(48 << 20, max(32 << 20, 4 * block_bytes + (8 << 20))))

    kernel = functools.partial(_seg_loss_kernel, num_classes=c, rows=rows,
                               row_tile=row_tile)

    partials = pl.pallas_call(
        kernel,
        out_shape=jax.ShapeDtypeStruct((b, s, 1, 1), jnp.float32),
        grid=(b, s, n_t),
        in_specs=[
            pl.BlockSpec(memory_space=pltpu.MemorySpace.SMEM),       # class weights (c,)
            pl.BlockSpec((None, None, c, row_tile, _LANES),          # logits tile
                         lambda i, j, t: (i, j, 0, t, 0)),
            pl.BlockSpec((None, None, None, row_tile, _LANES),       # labels tile
                         lambda i, j, t: (i, j, 0, t, 0)),
        ],
        out_specs=pl.BlockSpec((None, None, 1, 1),                   # per-(b,s) partial
                               lambda i, j, t: (i, j, 0, 0)),
        compiler_params=pltpu.CompilerParams(
            dimension_semantics=("parallel", "parallel", "arbitrary"),
            vmem_limit_bytes=vmem_limit),
    )(wts, pred, tgt)

    # Future discount is a per-(b, s) scalar -> apply on the tiny partials
    # array instead of per pixel inside the kernel.
    disc = jnp.float32(future_discount) ** jnp.arange(s, dtype=jnp.float32)
    per_bs = partials[:, :, 0, 0]
    # torch.mean over (b, s, h*w); ignored pixels contribute 0 but count in N.
    return jnp.sum(per_bs * disc[None, :]) / (b * s * hw)


def _reference_loss(prediction, target, class_weights, ignore_index,
                    future_discount):
    b, s, c, h, w = prediction.shape
    pred = prediction.astype(jnp.float32).reshape(b * s, c, h, w)
    tgt = target.reshape(b * s, h, w)
    logp = jax.nn.log_softmax(pred, axis=1)
    tgt_safe = jnp.where(tgt == ignore_index, 0, tgt)
    gathered = jnp.take_along_axis(logp, tgt_safe[:, None], axis=1)[:, 0]
    w_t = class_weights[tgt_safe]
    valid = tgt != ignore_index
    loss = jnp.where(valid, -w_t * gathered, 0.0)
    loss = loss.reshape(b, s, h, w)
    disc = jnp.float32(future_discount) ** jnp.arange(s, dtype=loss.dtype)
    loss = loss * disc[None, :, None, None]
    return jnp.mean(loss)


def _run_case(key, b, s, c, h, w, ignore_index, future_discount):
    k1, k2, k3 = jax.random.split(key, 3)
    prediction = jax.random.normal(k1, (b, s, c, h, w), dtype=jnp.float32)
    target = jax.random.randint(k2, (b, s, 1, h, w), 0, c, dtype=jnp.int32)
    ignore_mask = jax.random.uniform(k3, (b, s, 1, h, w)) < 0.1
    target = jnp.where(ignore_mask, ignore_index, target)
    class_weights = jnp.linspace(0.5, 2.0, c, dtype=jnp.float32)

    out = segmentation_loss(
        prediction, target, class_weights,
        ignore_index=ignore_index, use_top_k=False, top_k_ratio=1.0,
        future_discount=future_discount)
    out = jax.block_until_ready(out)

    ref = _reference_loss(prediction, target, class_weights, ignore_index,
                          future_discount)
    assert jnp.allclose(out, ref, rtol=1e-5, atol=1e-6), (out, ref)


if __name__ == "__main__":
    key = jax.random.PRNGKey(0)
    k_a, k_b, k_c = jax.random.split(key, 3)

    # Case 1: 128-multiple spatial size, rows < 8 (single whole-frame tile).
    _run_case(k_a, b=2, s=3, c=4, h=16, w=16,
              ignore_index=255, future_discount=0.9)

    # Case 2: non-128-multiple spatial size (exercises the lane-pad path).
    _run_case(k_b, b=2, s=2, c=4, h=10, w=10,
              ignore_index=255, future_discount=0.95)

    # Case 3: rows not a multiple of the row tile (exercises the ragged
    # last-tile mask and multi-tile accumulation), b=1 (s-parallel grid).
    _run_case(k_c, b=1, s=2, c=3, h=36, w=32,
              ignore_index=255, future_discount=0.8)

    print("KERNEL_OK")
</pallas_src>

<mosaic_0001>
module attributes {stable_mosaic.version = 11 : i64} {
  func.func @_seg_loss_kernel(%arg0: i32, %arg1: i32, %arg2: i32, %arg3: memref<4xf32, #tpu.memory_space<smem>>, %arg4: memref<1x1x4x2x128xf32, #tpu.memory_space<vmem>>, %arg5: memref<1x1x1x2x128xi32, #tpu.memory_space<vmem>>, %arg6: memref<1x1x1x1xf32, #tpu.memory_space<vmem>>) attributes {dimension_semantics = [#tpu.dimension_semantics<parallel>, #tpu.dimension_semantics<parallel>, #tpu.dimension_semantics<arbitrary>], iteration_bounds = array<i64: 2, 3, 1>, scalar_prefetch = 0 : i64, scratch_operands = 0 : i64, tpu.core_type = #tpu.core_type<tc>, window_params = [{transform_indices = @transform_0, window_bounds = array<i64: 4>}, {transform_indices = @transform_1, window_bounds = array<i64: 1, 1, 4, 2, 128>}, {transform_indices = @transform_2, window_bounds = array<i64: 1, 1, 1, 2, 128>}, {transform_indices = @transform_3, window_bounds = array<i64: 1, 1, 1, 1>}]} {
    %c0_i32 = arith.constant 0 : i32
    %0 = arith.cmpi eq, %arg2, %c0_i32 : i32
    %1 = arith.extui %0 : i1 to i32
    %c0_i32_0 = arith.constant 0 : i32
    %2 = arith.cmpi ne, %1, %c0_i32_0 : i32
    scf.if %2 {
      %cst_77 = arith.constant 0.000000e+00 : f32
      %87 = vector.broadcast %cst_77 : f32 to vector<1x1xf32>
      %c0_78 = arith.constant 0 : index
      %c0_79 = arith.constant 0 : index
      %c0_80 = arith.constant 0 : index
      %c0_81 = arith.constant 0 : index
      %88 = vector.load %arg6[%c0_78, %c0_79, %c0_80, %c0_81] : memref<1x1x1x1xf32, #tpu.memory_space<vmem>>, vector<1x1x1x1xf32>
      %89 = vector.shape_cast %88 : vector<1x1x1x1xf32> to vector<1x1xf32>
      %90 = vector.shape_cast %87 : vector<1x1xf32> to vector<1x1x1x1xf32>
      tpu.vector_store %arg6[%c0_78, %c0_79, %c0_80, %c0_81], %90 {strides = array<i32>} : memref<1x1x1x1xf32, #tpu.memory_space<vmem>>, vector<1x1x1x1xf32>,
    } else {
    }
    %c0 = arith.constant 0 : index
    %c0_1 = arith.constant 0 : index
    %c0_2 = arith.constant 0 : index
    %c0_3 = arith.constant 0 : index
    %c0_4 = arith.constant 0 : index
    %3 = vector.load %arg4[%c0, %c0_1, %c0_2, %c0_3, %c0_4] : memref<1x1x4x2x128xf32, #tpu.memory_space<vmem>>, vector<1x1x1x2x128xf32>
    %4 = vector.shape_cast %3 : vector<1x1x1x2x128xf32> to vector<2x128xf32>
    %c0_5 = arith.constant 0 : index
    %c0_6 = arith.constant 0 : index
    %c1 = arith.constant 1 : index
    %c0_7 = arith.constant 0 : index
    %c0_8 = arith.constant 0 : index
    %5 = vector.load %arg4[%c0_5, %c0_6, %c1, %c0_7, %c0_8] : memref<1x1x4x2x128xf32, #tpu.memory_space<vmem>>, vector<1x1x1x2x128xf32>
    %6 = vector.shape_cast %5 : vector<1x1x1x2x128xf32> to vector<2x128xf32>
    %7 = arith.maximumf %4, %6 : vector<2x128xf32>
    %c0_9 = arith.constant 0 : index
    %c0_10 = arith.constant 0 : index
    %c2 = arith.constant 2 : index
    %c0_11 = arith.constant 0 : index
    %c0_12 = arith.constant 0 : index
    %8 = vector.load %arg4[%c0_9, %c0_10, %c2, %c0_11, %c0_12] : memref<1x1x4x2x128xf32, #tpu.memory_space<vmem>>, vector<1x1x1x2x128xf32>
    %9 = vector.shape_cast %8 : vector<1x1x1x2x128xf32> to vector<2x128xf32>
    %10 = arith.maximumf %7, %9 : vector<2x128xf32>
    %c0_13 = arith.constant 0 : index
    %c0_14 = arith.constant 0 : index
    %c3 = arith.constant 3 : index
    %c0_15 = arith.constant 0 : index
    %c0_16 = arith.constant 0 : index
    %11 = vector.load %arg4[%c0_13, %c0_14, %c3, %c0_15, %c0_16] : memref<1x1x4x2x128xf32, #tpu.memory_space<vmem>>, vector<1x1x1x2x128xf32>
    %12 = vector.shape_cast %11 : vector<1x1x1x2x128xf32> to vector<2x128xf32>
    %13 = arith.maximumf %10, %12 : vector<2x128xf32>
    %cst = arith.constant 0.000000e+00 : f32
    %14 = vector.broadcast %cst : f32 to vector<2x128xf32>
    %c0_17 = arith.constant 0 : index
    %c0_18 = arith.constant 0 : index
    %c0_19 = arith.constant 0 : index
    %c0_20 = arith.constant 0 : index
    %c0_21 = arith.constant 0 : index
    %15 = vector.load %arg4[%c0_17, %c0_18, %c0_19, %c0_20, %c0_21] : memref<1x1x4x2x128xf32, #tpu.memory_space<vmem>>, vector<1x1x1x2x128xf32>
    %16 = vector.shape_cast %15 : vector<1x1x1x2x128xf32> to vector<2x128xf32>
    %17 = arith.subf %16, %13 : vector<2x128xf32>
    %18 = math.exp %17 : vector<2x128xf32>
    %19 = arith.addf %14, %18 : vector<2x128xf32>
    %c0_22 = arith.constant 0 : index
    %c0_23 = arith.constant 0 : index
    %c1_24 = arith.constant 1 : index
    %c0_25 = arith.constant 0 : index
    %c0_26 = arith.constant 0 : index
    %20 = vector.load %arg4[%c0_22, %c0_23, %c1_24, %c0_25, %c0_26] : memref<1x1x4x2x128xf32, #tpu.memory_space<vmem>>, vector<1x1x1x2x128xf32>
    %21 = vector.shape_cast %20 : vector<1x1x1x2x128xf32> to vector<2x128xf32>
    %22 = arith.subf %21, %13 : vector<2x128xf32>
    %23 = math.exp %22 : vector<2x128xf32>
    %24 = arith.addf %19, %23 : vector<2x128xf32>
    %c0_27 = arith.constant 0 : index
    %c0_28 = arith.constant 0 : index
    %c2_29 = arith.constant 2 : index
    %c0_30 = arith.constant 0 : index
    %c0_31 = arith.constant 0 : index
    %25 = vector.load %arg4[%c0_27, %c0_28, %c2_29, %c0_30, %c0_31] : memref<1x1x4x2x128xf32, #tpu.memory_space<vmem>>, vector<1x1x1x2x128xf32>
    %26 = vector.shape_cast %25 : vector<1x1x1x2x128xf32> to vector<2x128xf32>
    %27 = arith.subf %26, %13 : vector<2x128xf32>
    %28 = math.exp %27 : vector<2x128xf32>
    %29 = arith.addf %24, %28 : vector<2x128xf32>
    %c0_32 = arith.constant 0 : index
    %c0_33 = arith.constant 0 : index
    %c3_34 = arith.constant 3 : index
    %c0_35 = arith.constant 0 : index
    %c0_36 = arith.constant 0 : index
    %30 = vector.load %arg4[%c0_32, %c0_33, %c3_34, %c0_35, %c0_36] : memref<1x1x4x2x128xf32, #tpu.memory_space<vmem>>, vector<1x1x1x2x128xf32>
    %31 = vector.shape_cast %30 : vector<1x1x1x2x128xf32> to vector<2x128xf32>
    %32 = arith.subf %31, %13 : vector<2x128xf32>
    %33 = math.exp %32 : vector<2x128xf32>
    %34 = arith.addf %29, %33 : vector<2x128xf32>
    %35 = math.log %34 : vector<2x128xf32>
    %36 = arith.addf %13, %35 : vector<2x128xf32>
    %c0_37 = arith.constant 0 : index
    %c0_38 = arith.constant 0 : index
    %c0_39 = arith.constant 0 : index
    %c0_40 = arith.constant 0 : index
    %c0_41 = arith.constant 0 : index
    %37 = vector.load %arg5[%c0_37, %c0_38, %c0_39, %c0_40, %c0_41] : memref<1x1x1x2x128xi32, #tpu.memory_space<vmem>>, vector<1x1x1x2x128xi32>
    %38 = vector.shape_cast %37 : vector<1x1x1x2x128xi32> to vector<2x128xi32>
    %cst_42 = arith.constant 0.000000e+00 : f32
    %39 = vector.broadcast %cst_42 : f32 to vector<2x128xf32>
    %c0_i32_43 = arith.constant 0 : i32
    %40 = vector.broadcast %c0_i32_43 : i32 to vector<2x128xi32>
    %41 = arith.cmpi eq, %38, %40 : vector<2x128xi32>
    %c0_44 = arith.constant 0 : index
    %42 = memref.load %arg3[%c0_44] : memref<4xf32, #tpu.memory_space<smem>>
    %c0_45 = arith.constant 0 : index
    %c0_46 = arith.constant 0 : index
    %c0_47 = arith.constant 0 : index
    %c0_48 = arith.constant 0 : index
    %c0_49 = arith.constant 0 : index
    %43 = vector.load %arg4[%c0_45, %c0_46, %c0_47, %c0_48, %c0_49] : memref<1x1x4x2x128xf32, #tpu.memory_space<vmem>>, vector<1x1x1x2x128xf32>
    %44 = vector.shape_cast %43 : vector<1x1x1x2x128xf32> to vector<2x128xf32>
    %45 = arith.subf %36, %44 : vector<2x128xf32>
    %46 = vector.broadcast %42 : f32 to vector<2x128xf32>
    %47 = arith.mulf %46, %45 : vector<2x128xf32>
    %48 = arith.select %41, %47, %39 : vector<2x128xi1>, vector<2x128xf32>
    %c1_i32 = arith.constant 1 : i32
    %49 = vector.broadcast %c1_i32 : i32 to vector<2x128xi32>
    %50 = arith.cmpi eq, %38, %49 : vector<2x128xi32>
    %c1_50 = arith.constant 1 : index
    %51 = memref.load %arg3[%c1_50] : memref<4xf32, #tpu.memory_space<smem>>
    %c0_51 = arith.constant 0 : index
    %c0_52 = arith.constant 0 : index
    %c1_53 = arith.constant 1 : index
    %c0_54 = arith.constant 0 : index
    %c0_55 = arith.constant 0 : index
    %52 = vector.load %arg4[%c0_51, %c0_52, %c1_53, %c0_54, %c0_55] : memref<1x1x4x2x128xf32, #tpu.memory_space<vmem>>, vector<1x1x1x2x128xf32>
    %53 = vector.shape_cast %52 : vector<1x1x1x2x128xf32> to vector<2x128xf32>
    %54 = arith.subf %36, %53 : vector<2x128xf32>
    %55 = vector.broadcast %51 : f32 to vector<2x128xf32>
    %56 = arith.mulf %55, %54 : vector<2x128xf32>
    %57 = arith.select %50, %56, %48 : vector<2x128xi1>, vector<2x128xf32>
    %c2_i32 = arith.constant 2 : i32
    %58 = vector.broadcast %c2_i32 : i32 to vector<2x128xi32>
    %59 = arith.cmpi eq, %38, %58 : vector<2x128xi32>
    %c2_56 = arith.constant 2 : index
    %60 = memref.load %arg3[%c2_56] : memref<4xf32, #tpu.memory_space<smem>>
    %c0_57 = arith.constant 0 : index
    %c0_58 = arith.constant 0 : index
    %c2_59 = arith.constant 2 : index
    %c0_60 = arith.constant 0 : index
    %c0_61 = arith.constant 0 : index
    %61 = vector.load %arg4[%c0_57, %c0_58, %c2_59, %c0_60, %c0_61] : memref<1x1x4x2x128xf32, #tpu.memory_space<vmem>>, vector<1x1x1x2x128xf32>
    %62 = vector.shape_cast %61 : vector<1x1x1x2x128xf32> to vector<2x128xf32>
    %63 = arith.subf %36, %62 : vector<2x128xf32>
    %64 = vector.broadcast %60 : f32 to vector<2x128xf32>
    %65 = arith.mulf %64, %63 : vector<2x128xf32>
    %66 = arith.select %59, %65, %57 : vector<2x128xi1>, vector<2x128xf32>
    %c3_i32 = arith.constant 3 : i32
    %67 = vector.broadcast %c3_i32 : i32 to vector<2x128xi32>
    %68 = arith.cmpi eq, %38, %67 : vector<2x128xi32>
    %c3_62 = arith.constant 3 : index
    %69 = memref.load %arg3[%c3_62] : memref<4xf32, #tpu.memory_space<smem>>
    %c0_63 = arith.constant 0 : index
    %c0_64 = arith.constant 0 : index
    %c3_65 = arith.constant 3 : index
    %c0_66 = arith.constant 0 : index
    %c0_67 = arith.constant 0 : index
    %70 = vector.load %arg4[%c0_63, %c0_64, %c3_65, %c0_66, %c0_67] : memref<1x1x4x2x128xf32, #tpu.memory_space<vmem>>, vector<1x1x1x2x128xf32>
    %71 = vector.shape_cast %70 : vector<1x1x1x2x128xf32> to vector<2x128xf32>
    %72 = arith.subf %36, %71 : vector<2x128xf32>
    %73 = vector.broadcast %69 : f32 to vector<2x128xf32>
    %74 = arith.mulf %73, %72 : vector<2x128xf32>
    %75 = arith.select %68, %74, %66 : vector<2x128xi1>, vector<2x128xf32>
    %c0_68 = arith.constant 0 : index
    %c0_69 = arith.constant 0 : index
    %c0_70 = arith.constant 0 : index
    %c0_71 = arith.constant 0 : index
    %76 = vector.load %arg6[%c0_68, %c0_69, %c0_70, %c0_71] : memref<1x1x1x1xf32, #tpu.memory_space<vmem>>, vector<1x1x1x1xf32>
    %77 = vector.shape_cast %76 : vector<1x1x1x1xf32> to vector<1x1xf32>
    %78 = vector.shape_cast %75 : vector<2x128xf32> to vector<1x2x128xf32>
    %cst_72 = arith.constant dense<0.000000e+00> : vector<1xf32>
    %79 = vector.multi_reduction <add>, %78, %cst_72 [1, 2] : vector<1x2x128xf32> to vector<1xf32>
    %80 = vector.shape_cast %79 : vector<1xf32> to vector<1x1x1xf32>
    %81 = vector.extract %80[0, 0, 0] : f32 from vector<1x1x1xf32>
    %82 = vector.broadcast %81 : f32 to vector<1x1xf32>
    %83 = arith.addf %77, %82 : vector<1x1xf32>
    %c0_73 = arith.constant 0 : index
    %c0_74 = arith.constant 0 : index
    %c0_75 = arith.constant 0 : index
    %c0_76 = arith.constant 0 : index
    %84 = vector.load %arg6[%c0_73, %c0_74, %c0_75, %c0_76] : memref<1x1x1x1xf32, #tpu.memory_space<vmem>>, vector<1x1x1x1xf32>
    %85 = vector.shape_cast %84 : vector<1x1x1x1xf32> to vector<1x1xf32>
    %86 = vector.shape_cast %83 : vector<1x1xf32> to vector<1x1x1x1xf32>
    tpu.vector_store %arg6[%c0_73, %c0_74, %c0_75, %c0_76], %86 {strides = array<i32>} : memref<1x1x1x1xf32, #tpu.memory_space<vmem>>, vector<1x1x1x1xf32>,
    return
  }
  func.func @transform_0(%arg0: i32, %arg1: i32, %arg2: i32) -> i32 {
    %c0_i32 = arith.constant 0 : i32
    %c0_i32_0 = arith.constant 0 : i32
    return %c0_i32 : i32
  }
  func.func @transform_1(%arg0: i32, %arg1: i32, %arg2: i32) -> (i32, i32, i32, i32, i32) {
    %c0_i32 = arith.constant 0 : i32
    %c0_i32_0 = arith.constant 0 : i32
    %c0_i32_1 = arith.constant 0 : i32
    return %arg0, %arg1, %c0_i32, %arg2, %c0_i32_0 : i32, i32, i32, i32, i32
  }
  func.func @transform_2(%arg0: i32, %arg1: i32, %arg2: i32) -> (i32, i32, i32, i32, i32) {
    %c0_i32 = arith.constant 0 : i32
    %c0_i32_0 = arith.constant 0 : i32
    %c0_i32_1 = arith.constant 0 : i32
    return %arg0, %arg1, %c0_i32, %arg2, %c0_i32_0 : i32, i32, i32, i32, i32
  }
  func.func @transform_3(%arg0: i32, %arg1: i32, %arg2: i32) -> (i32, i32, i32, i32) {
    %c0_i32 = arith.constant 0 : i32
    %c0_i32_0 = arith.constant 0 : i32
    %c0_i32_1 = arith.constant 0 : i32
    return %arg0, %arg1, %c0_i32, %c0_i32_0 : i32, i32, i32, i32
  }
}

</mosaic_0001>

<llo_original>
// kernel: tpu_custom_call.1
$region0: #{tpu_custom_call.1}
  #allocation0 [shape = 'u32[]', space=smem, size = 0x4, offset = 0x4, fixed_abs, tag = 'smem constant byte address 0x4 - core index']
  #allocation1 [shape = 'u32[144,128]{1,0:T(1,128)}', space=vmem, size = 0x12000, scoped, tag = 'internal scratch']
  %s0 = inlined_call_operand.hbm [shape: f32[4], index: 0, kind: input, shape index: {}]
  %s1 = inlined_call_operand.hbm [shape: f32[2,3,4,2,128], index: 1, kind: input, shape index: {}]
  %s2 = inlined_call_operand.hbm [shape: s32[2,3,1,2,128], index: 2, kind: input, shape index: {}]
  %s3 = inlined_call_operand.vmem [shape: f32[2,3,1,1], index: 3, kind: output, shape index: {}]
  %s4 = sld [smem:[#allocation0]]
  $region61: #{tpu_custom_call.1} parent=0
    _
  %s6 = ssub.s32 1, %s4
  %s7 = scalar_select 0, %s6, %s4
  $region1: #{tpu_custom_call.1} parent=0
    #allocation2 [shape = 'u8[512]{0}', space=smem, size = 0x200, scoped, tag = 'input window, operand 0, single buffered']
    #allocation3 [shape = 's32[2]{0}', space=sflag, size = 0x8, scoped, tag = 'scoped memory for tpu_custom_call.1']
    #allocation4 [shape = 's32[2]{0}', space=sflag, size = 0x8, scoped, tag = 'scoped memory for tpu_custom_call.1']
    #allocation5 [shape = 'u8[8192]{0}', space=vmem, size = 0x2000, scoped, tag = 'input window, operand 1']
    #allocation6 [shape = 'u8[2048]{0}', space=vmem, size = 0x800, scoped, tag = 'input window, operand 2']
    #allocation7 [shape = 's32[2]{0}', space=sflag, size = 0x8, scoped, tag = 'scoped memory for tpu_custom_call.1']
    %8 = vsyncpa [#allocation4], 0
    %9 = vsyncpa [#allocation3], 0
    %s10 = scalar_lea.sflag [#allocation3], 1
    %11 = vsyncpa %s10, 0
    %12 = vsyncpa [#allocation7], 0
    %s13 = scalar_lea.sflag [#allocation7], 1
    %14 = vsyncpa %s13, 0
    loop: start=0, step=1, limit=8
    $region2: #{tpu_custom_call.1} parent=1 // loop_pre_header
      _
    $region3: #{tpu_custom_call.1} parent=1 // loop_header
      %s16 = sphi 0, %s20
      %p17 = scmp.ge.s32.totalorder %s16, 8
      %s23 = sphi 0, %s42
      %s24 = sphi 0, %s38
      %s25 = sphi 0, %s34
      %s26 = sphi 0, %s23
      %s27 = sphi 0, %s24
      %s28 = sphi 0, %s25
      %s29 = sphi 0, %s26
      %s30 = sphi 0, %s27
      %s31 = sphi 0, %s28
      %s43 = sphi 0, %s43
      %s45 = sphi 0, %s43
      %s46 = sphi 0, %s45
      %s60 = sphi 0, %s46
      %s70 = sphi 0, %s72
      %s73 = sphi 0, %s70
      %s74 = sphi 0, %s73
      %s90 = sphi 0, %s74
      %s100 = sphi 0, %s102
      %s103 = sphi 0, %s100
      %s104 = sphi 0, %s103
      %s120 = sphi 0, %s104
      %s128 = sphi 0, %s130
      %s131 = sphi 0, %s128
      %s132 = sphi 0, %s131
      %s148 = sphi 0, %s132
    $region4: #{tpu_custom_call.1} parent=1 // loop_header_branch
      %19 = sbr.rel (%p17) target = $region8
    $region5: #{tpu_custom_call.1} parent=1 // loop_body
      %s21 = ssub.s32 %s16, 1
      %s22 = ssub.s32 %s16, 2
      %s32 = sadd.s32 1, %s25
      %p33 = scmp.ge.s32.totalorder %s32, 1
      %s34 = scalar_select %p33, 0, %s32
      %s35 = sadd.s32 1, %s24
      %s36 = scalar_select %p33, %s35, %s24
      %p37 = scmp.ge.s32.totalorder %s36, 3
      %s38 = scalar_select %p37, 0, %s36
      %s39 = sadd.s32 1, %s23
      %s40 = scalar_select %p37, %s39, %s23
      %p41 = scmp.ge.s32.totalorder %s40, 2
      %s42 = scalar_select %p41, 0, %s40
      %s44 = sadd.s32 %s43, 1
      %p47 = scmp.eq.s32.totalorder %s16, 5
      %p48 = scmp.ne.s32.totalorder %s43, %s45
      %p49 = scmp.eq.s32.totalorder %s16, 0
      %p50 = por %p48, %p49
      %p51 = scmp.ne.s32.totalorder %s43, %s45
      %p52 = scmp.eq.s32.totalorder %s21, 5
      %p53 = por %p51, %p52
      %p54 = scmp.ne.s32.totalorder %s45, %s46
      %p55 = scmp.eq.s32.totalorder %s21, 0
      %p56 = por %p54, %p55
      %p57 = scmp.ne.s32.totalorder %s45, %s46
      %p58 = scmp.eq.s32.totalorder %s22, 5
      %p59 = por %p57, %p58
      %p61 = scmp.ne.s32.totalorder %s46, %s60
      %p62 = scmp.eq.s32.totalorder %s22, 0
      %p63 = por %p61, %p62
      %s64 = ssub.s32 %s23, %s42
      %s65 = ssub.s32 %s24, %s38
      %s66 = sor.u32 %s64, %s65
      %s67 = ssub.s32 %s25, %s34
      %s68 = sor.u32 %s66, %s67
      %p69 = scmp.eq.s32.totalorder %s68, 0
      %s71 = sadd.s32 %s70, 1
      %s72 = scalar_select %p69, %s70, %s71
      %p75 = pneg %p69
      %p76 = scmp.eq.s32.totalorder %s16, 5
      %p77 = por %p75, %p76
      %p78 = scmp.ne.s32.totalorder %s70, %s73
      %p79 = scmp.eq.s32.totalorder %s16, 0
      %p80 = por %p78, %p79
      %p81 = scmp.ne.s32.totalorder %s70, %s73
      %p82 = scmp.eq.s32.totalorder %s21, 5
      %p83 = por %p81, %p82
      %p84 = scmp.ne.s32.totalorder %s73, %s74
      %p85 = scmp.eq.s32.totalorder %s21, 0
      %p86 = por %p84, %p85
      %p87 = scmp.ne.s32.totalorder %s73, %s74
      %p88 = scmp.eq.s32.totalorder %s22, 5
      %p89 = por %p87, %p88
      %p91 = scmp.ne.s32.totalorder %s74, %s90
      %p92 = scmp.eq.s32.totalorder %s22, 0
      %p93 = por %p91, %p92
      %s94 = ssub.s32 %s23, %s42
      %s95 = ssub.s32 %s24, %s38
      %s96 = sor.u32 %s94, %s95
      %s97 = ssub.s32 %s25, %s34
      %s98 = sor.u32 %s96, %s97
      %p99 = scmp.eq.s32.totalorder %s98, 0
      %s101 = sadd.s32 %s100, 1
      %s102 = scalar_select %p99, %s100, %s101
      %p105 = pneg %p99
      %p106 = scmp.eq.s32.totalorder %s16, 5
      %p107 = por %p105, %p106
      %p108 = scmp.ne.s32.totalorder %s100, %s103
      %p109 = scmp.eq.s32.totalorder %s16, 0
      %p110 = por %p108, %p109
      %p111 = scmp.ne.s32.totalorder %s100, %s103
      %p112 = scmp.eq.s32.totalorder %s21, 5
      %p113 = por %p111, %p112
      %p114 = scmp.ne.s32.totalorder %s103, %s104
      %p115 = scmp.eq.s32.totalorder %s21, 0
      %p116 = por %p114, %p115
      %p117 = scmp.ne.s32.totalorder %s103, %s104
      %p118 = scmp.eq.s32.totalorder %s22, 5
      %p119 = por %p117, %p118
      %p121 = scmp.ne.s32.totalorder %s104, %s120
      %p122 = scmp.eq.s32.totalorder %s22, 0
      %p123 = por %p121, %p122
      %s124 = ssub.s32 %s23, %s42
      %s125 = ssub.s32 %s24, %s38
      %s126 = sor.u32 %s124, %s125
      %p127 = scmp.eq.s32.totalorder %s126, 0
      %s129 = sadd.s32 %s128, 1
      %s130 = scalar_select %p127, %s128, %s129
      %p133 = pneg %p127
      %p134 = scmp.eq.s32.totalorder %s16, 5
      %p135 = por %p133, %p134
      %p136 = scmp.ne.s32.totalorder %s128, %s131
      %p137 = scmp.eq.s32.totalorder %s16, 0
      %p138 = por %p136, %p137
      %p139 = scmp.ne.s32.totalorder %s128, %s131
      %p140 = scmp.eq.s32.totalorder %s21, 5
      %p141 = por %p139, %p140
      %p142 = scmp.ne.s32.totalorder %s131, %s132
      %p143 = scmp.eq.s32.totalorder %s21, 0
      %p144 = por %p142, %p143
      %p145 = scmp.ne.s32.totalorder %s131, %s132
      %p146 = scmp.eq.s32.totalorder %s22, 5
      %p147 = por %p145, %p146
      %p149 = scmp.ne.s32.totalorder %s132, %s148
      %p150 = scmp.eq.s32.totalorder %s22, 0
      %p151 = por %p149, %p150
      %p152 = scmp.le.s32.totalorder 1, %s16
      %p153 = scmp.lt.s32.totalorder %s16, 7
      %p154 = pnand %p152, %p153
      %p155 = pneg %p154
      // Predicated region
      $region9: #{tpu_custom_call.1} parent=5 // pred_check
        _
      $region10: #{tpu_custom_call.1} parent=5 // pred_check_branch
        %157 = sbr.rel (%p154) target = $region12
      $region11: #{tpu_custom_call.1} parent=5 // pred_region
        %s158 = ssub.s32 %s16, 1
        // Predicated region
        $region13: #{tpu_custom_call.1} parent=11 // pred_check
          %p159 = pneg %p56
        $region14: #{tpu_custom_call.1} parent=11 // pred_check_branch
          %161 = sbr.rel (%p159) target = $region16
        $region15: #{tpu_custom_call.1} parent=11 // pred_region
          %s163 = ssub.s32 16, 16
          %164 = vsyncadd [#allocation4], %s163
          %167 = dma.hbm_to_smem %s0, 16, [#allocation2], [#allocation4]
        $region16: #{tpu_custom_call.1} parent=11 // pred_fallthru
          _
      $region12: #{tpu_custom_call.1} parent=5 // pred_fallthru
        _
      %p168 = scmp.lt.s32.totalorder %s16, 6
      // Predicated region
      $region17: #{tpu_custom_call.1} parent=5 // pred_check
        %p169 = pneg %p168
      $region18: #{tpu_custom_call.1} parent=5 // pred_check_branch
        %171 = sbr.rel (%p169) target = $region20
      $region19: #{tpu_custom_call.1} parent=5 // pred_region
        // Predicated region
        $region21: #{tpu_custom_call.1} parent=19 // pred_check
          %p172 = pneg %p80
        $region22: #{tpu_custom_call.1} parent=19 // pred_check_branch
          %174 = sbr.rel (%p172) target = $region24
        $region23: #{tpu_custom_call.1} parent=19 // pred_region
          %s175 = sand.u32 %s70, 1
          %s176 = scalar_lea.sflag [#allocation3], %s175
          %s177 = sand.u32 %s70, 1
          %s178 = smul.addr %s177, 8
          %s179 = scalar_lea.vmem [#allocation5], %s178
          %s181 = ssub.s32 128, 128
          %182 = vsyncadd %s176, %s181
          %s183 = smul.addr %s24, 4
          %s184 = sadd.s32 %s25, %s183
          %s185 = smul.addr %s23, 12
          %s186 = sadd.s32 %s184, %s185
          %s187 = smul.addr %s186, 32
          %s188 = scalar_lea.hbm %s1, %s187
          %s189 = sshll.u32 %s179, 4
          %s190 = int_to_ptr.vmem [resolvable:$true] %s189
          %195 = dma.hbm_to_vmem [thread:$0]  %s188, 128, %s190, %s176, 32, 32, 2
        $region24: #{tpu_custom_call.1} parent=19 // pred_fallthru
          _
        // Predicated region
        $region25: #{tpu_custom_call.1} parent=19 // pred_check
          %p196 = pneg %p110
        $region26: #{tpu_custom_call.1} parent=19 // pred_check_branch
          %198 = sbr.rel (%p196) target = $region28
        $region27: #{tpu_custom_call.1} parent=19 // pred_region
          %s199 = sand.u32 %s100, 1
          %s200 = scalar_lea.sflag [#allocation7], %s199
          %s201 = sand.u32 %s100, 1
          %s202 = smul.addr %s201, 2
          %s203 = scalar_lea.vmem [#allocation6], %s202
          %s205 = ssub.s32 32, 32
          %206 = vsyncadd %s200, %s205
          %s207 = sadd.s32 %s25, %s24
          %s208 = smul.addr %s23, 3
          %s209 = sadd.s32 %s207, %s208
          %s210 = smul.addr %s209, 32
          %s211 = scalar_lea.hbm %s2, %s210
          %s213 = sshll.u32 %s203, 4
          %s214 = int_to_ptr.vmem [resolvable:$true] %s213
          %216 = dma.hbm_to_vmem [thread:$0]  %s211, 32, %s214, %s200
        $region28: #{tpu_custom_call.1} parent=19 // pred_fallthru
          _
      $region20: #{tpu_custom_call.1} parent=5 // pred_fallthru
        _
      %p217 = scmp.le.s32.totalorder 1, %s16
      %p218 = scmp.lt.s32.totalorder %s16, 7
      %p219 = pnand %p217, %p218
      %p220 = pneg %p219
      // Predicated region
      $region29: #{tpu_custom_call.1} parent=5 // pred_check
        _
      $region30: #{tpu_custom_call.1} parent=5 // pred_check_branch
        %222 = sbr.rel (%p219) target = $region32
      $region31: #{tpu_custom_call.1} parent=5 // pred_region
        %s223 = ssub.s32 %s16, 1
        // Predicated region
        $region33: #{tpu_custom_call.1} parent=31 // pred_check
          %p224 = pneg %p56
        $region34: #{tpu_custom_call.1} parent=31 // pred_check_branch
          %226 = sbr.rel (%p224) target = $region36
        $region35: #{tpu_custom_call.1} parent=31 // pred_region
          %227 = dma.done [#allocation4], 16
        $region36: #{tpu_custom_call.1} parent=31 // pred_fallthru
          _
        %s228 = sand.u32 %s73, 1
        %s229 = scalar_lea.sflag [#allocation3], %s228
        %s230 = sand.u32 %s73, 1
        %s231 = smul.addr %s230, 8
        %s232 = scalar_lea.vmem [#allocation5], %s231
        // Predicated region
        $region37: #{tpu_custom_call.1} parent=31 // pred_check
          %p233 = pneg %p86
        $region38: #{tpu_custom_call.1} parent=31 // pred_check_branch
          %235 = sbr.rel (%p233) target = $region40
        $region39: #{tpu_custom_call.1} parent=31 // pred_region
          %236 = dma.done %s229, 128
        $region40: #{tpu_custom_call.1} parent=31 // pred_fallthru
          _
        %s237 = sand.u32 %s103, 1
        %s238 = scalar_lea.sflag [#allocation7], %s237
        %s239 = sand.u32 %s103, 1
        %s240 = smul.addr %s239, 2
        %s241 = scalar_lea.vmem [#allocation6], %s240
        // Predicated region
        $region41: #{tpu_custom_call.1} parent=31 // pred_check
          %p242 = pneg %p116
        $region42: #{tpu_custom_call.1} parent=31 // pred_check_branch
          %244 = sbr.rel (%p242) target = $region44
        $region43: #{tpu_custom_call.1} parent=31 // pred_region
          %245 = dma.done %s238, 32
        $region44: #{tpu_custom_call.1} parent=31 // pred_fallthru
          _
        %246 = sfence
        %p247 = pneg %p56
        %p248 = pneg %p53
        %s249 = sand.u32 %s73, 1
        %s250 = scalar_lea.sflag [#allocation3], %s249
        %s251 = sand.u32 %s73, 1
        %s252 = smul.addr %s251, 8
        %s253 = scalar_lea.vmem [#allocation5], %s252
        %p254 = pneg %p86
        %p255 = pneg %p83
        %s256 = sand.u32 %s103, 1
        %s257 = scalar_lea.sflag [#allocation7], %s256
        %s258 = sand.u32 %s103, 1
        %s259 = smul.addr %s258, 2
        %s260 = scalar_lea.vmem [#allocation6], %s259
        %p261 = pneg %p116
        %p262 = pneg %p113
        %p263 = pneg %p144
        %p264 = pneg %p141
        %p265 = scmp.lt.s32.totalorder %s26, 1
        %s266 = scalar_select %p265, %s26, 1
        %p267 = scmp.lt.s32.totalorder %s27, 2
        %s268 = scalar_select %p267, %s27, 2
        %s269 = smul.addr %s266, 3
        %s270 = sadd.s32 %s268, %s269
        %s271 = scalar_lea.vmem %s3, %s270
        %p272 = scmp.lt.s32.totalorder %s26, 1
        %s273 = scalar_select %p272, %s26, 1
        %p274 = scmp.lt.s32.totalorder %s27, 2
        %s275 = scalar_select %p274, %s27, 2
        %s276 = smul.addr %s273, 3
        %s277 = sadd.s32 %s275, %s276
        %s278 = scalar_lea.vmem %s3, %s277
        %p279 = scmp.eq.s32.totalorder %s28, 0
        // Predicated region
        $region45: #{tpu_custom_call.1} parent=31 // pred_check
          %p280 = pneg %p279
        $region46: #{tpu_custom_call.1} parent=31 // pred_check_branch
          %282 = sbr.rel (%p280) target = $region48
        $region47: #{tpu_custom_call.1} parent=31 // pred_region
          %vm283 = vcmask 0
          %284 = vst.msk [vmem:[%s278] sm:$0x1] %vm283, 0.0
        $region48: #{tpu_custom_call.1} parent=31 // pred_fallthru
          _
        %v285 = vld [vmem:[%s232] sm:$0x3]
        %s286 = scalar_lea.vmem %s232, 2 [#allocation5]
        %v287 = vld [vmem:[%s286] sm:$0x3]
        %v288 = vmax.f32 %v285, %v287
        %s289 = scalar_lea.vmem %s232, 4 [#allocation5]
        %v290 = vld [vmem:[%s289] sm:$0x3]
        %v291 = vmax.f32 %v288, %v290
        %s292 = scalar_lea.vmem %s232, 6 [#allocation5]
        %v293 = vld [vmem:[%s292] sm:$0x3]
        %v294 = vmax.f32 %v291, %v293
        %v295 = vsub.f32 %v285, %v294
        %v296 = vmul.f32 %v295, 1.442695
        %v297 = vpow.pop %v296
        %v298 = vadd.f32 %v297, 0.0
        %v299 = vsub.f32 %v287, %v294
        %v300 = vmul.f32 %v299, 1.442695
        %v301 = vpow.pop %v300
        %v302 = vadd.f32 %v298, %v301
        %v303 = vsub.f32 %v290, %v294
        %v304 = vmul.f32 %v303, 1.442695
        %v305 = vpow.pop %v304
        %v306 = vadd.f32 %v302, %v305
        %v307 = vsub.f32 %v293, %v294
        %v308 = vmul.f32 %v307, 1.442695
        %v309 = vpow.pop %v308
        %v310 = vadd.f32 %v306, %v309
        %v311 = vlog2.pop %v310
        %v312 = vmul.f32 %v311, 0.6931472
        %v313 = vadd.f32 %v294, %v312
        %v314 = vld [vmem:[%s241] sm:$0x3]
        %vm315 = vcmp.eq.s32.totalorder %v314, 0
        %s316 = sld [smem:[#allocation2]]
        %v317 = vsub.f32 %v313, %v285
        %v318 = vstv %s316
        %v319 = vmul.f32 %v318, %v317
        %v320 = vsel %vm315, %v319, 0.0
        %vm321 = vcmp.eq.s32.totalorder %v314, 1
        %s322 = sld [smem:[#allocation2 + $0x1]]
        %v323 = vsub.f32 %v313, %v287
        %v324 = vstv %s322
        %v325 = vmul.f32 %v324, %v323
        %v326 = vsel %vm321, %v325, %v320
        %vm327 = vcmp.eq.s32.totalorder %v314, 2
        %s328 = sld [smem:[#allocation2 + $0x2]]
        %v329 = vsub.f32 %v313, %v290
        %v330 = vstv %s328
        %v331 = vmul.f32 %v330, %v329
        %v332 = vsel %vm327, %v331, %v326
        %vm333 = vcmp.eq.s32.totalorder %v314, 3
        %s334 = sld [smem:[#allocation2 + $0x3]]
        %v335 = vsub.f32 %v313, %v293
        %v336 = vstv %s334
        %v337 = vmul.f32 %v336, %v335
        %v338 = vsel %vm333, %v337, %v332
        %v339 = vld [vmem:[%s278] sm:$0x1]
        %vm340 = vcmask 1041408
        %v341 = vsel %vm340, %v338, 0.0
        %342 = vadd.xlane.f32.xlu0 %v341
        %v343 = vpop.xlane.xlu0 %342
        %v344 = vrot.slane %v343, 4
        %v345 = vadd.f32 %v343, %v344
        %v346 = vrot.slane %v345, 2
        %v347 = vadd.f32 %v345, %v346
        %v348 = vrot.slane %v347, 1
        %v349 = vadd.f32 %v347, %v348
        %s350 = vtos %v349
        %v351 = vstv %s350
        %v352 = vadd.f32 %v339, %v351
        %vm353 = vcmask 0
        %354 = vst.msk [vmem:[%s278] sm:$0x1] %vm353, %v352
        %p355 = scmp.lt.s32.totalorder %s26, 1
        %s356 = scalar_select %p355, %s26, 1
        %p357 = scmp.lt.s32.totalorder %s27, 2
        %s358 = scalar_select %p357, %s27, 2
        %s359 = smul.addr %s356, 3
        %s360 = sadd.s32 %s358, %s359
        %s361 = scalar_lea.vmem %s3, %s360
        // Predicated region
        $region49: #{tpu_custom_call.1} parent=31 // pred_check
          %p362 = pneg %p141
        $region50: #{tpu_custom_call.1} parent=31 // pred_check_branch
          %364 = sbr.rel (%p362) target = $region52
        $region51: #{tpu_custom_call.1} parent=31 // pred_region
          _
        $region52: #{tpu_custom_call.1} parent=31 // pred_fallthru
          _
      $region32: #{tpu_custom_call.1} parent=5 // pred_fallthru
        _
      %p365 = scmp.le.s32.totalorder 2, %s16
      // Predicated region
      $region53: #{tpu_custom_call.1} parent=5 // pred_check
        %p366 = pneg %p365
      $region54: #{tpu_custom_call.1} parent=5 // pred_check_branch
        %368 = sbr.rel (%p366) target = $region56
      $region55: #{tpu_custom_call.1} parent=5 // pred_region
        %s369 = ssub.s32 %s16, 2
        // Predicated region
        $region57: #{tpu_custom_call.1} parent=55 // pred_check
          %p370 = pneg %p147
        $region58: #{tpu_custom_call.1} parent=55 // pred_check_branch
          %372 = sbr.rel (%p370) target = $region60
        $region59: #{tpu_custom_call.1} parent=55 // pred_region
          %p373 = scmp.lt.s32.totalorder %s29, 1
          %s374 = scalar_select %p373, %s29, 1
          %p375 = scmp.lt.s32.totalorder %s30, 2
          %s376 = scalar_select %p375, %s30, 2
          %s377 = smul.addr %s374, 3
          %s378 = sadd.s32 %s376, %s377
          %s379 = scalar_lea.vmem %s3, %s378
        $region60: #{tpu_custom_call.1} parent=55 // pred_fallthru
          _
      $region56: #{tpu_custom_call.1} parent=5 // pred_fallthru
        _
    $region6: #{tpu_custom_call.1} parent=1 // loop_footer
      %s20 = sadd.s32 1, %s16
    $region7: #{tpu_custom_call.1} parent=1 // loop_footer_branch
      %15 = sbr.rel target = $region3
    $region8: #{tpu_custom_call.1} parent=1 // loop_exit
      _
    %380 = vsyncpa [#allocation3], 1
    %s381 = scalar_lea.sflag [#allocation3], 1
    %382 = vsyncpa %s381, 1
    %383 = vsyncpa [#allocation7], 1
    %s384 = scalar_lea.sflag [#allocation7], 1
    %385 = vsyncpa %s384, 1
    %386 = vsyncpa [#allocation4], 1
    %s387 = scalar_lea.sflag [#allocation4], 1
    %388 = vsyncpa %s387, 1

</llo_original>
